<compile_context>
chip_gen: v7x
topology: tpu7x:2x2x1
jax: 0.10.0
libtpu: 0.0.40
codegen_flags: <defaults>
</compile_context>

<pallas_src>
import functools
import math

import jax
import jax.numpy as jnp
from jax import lax
from jax.experimental import pallas as pl
from jax.experimental.pallas import tpu as pltpu


@functools.lru_cache(maxsize=1)
def _vmem_limit():
    """Generation-aware VMEM budget: ~75% of per-core VMEM, capped at 96 MiB."""
    try:
        cap = int(pltpu.get_tpu_info().vmem_capacity_bytes)
    except Exception:
        cap = 64 * 1024 * 1024  # conservative fallback (v7x per-TC VMEM)
    return int(min(cap * 3 // 4, 96 * 1024 * 1024))


def _pick_tile(dim, candidates):
    """Largest candidate tile that evenly divides `dim`; else full extent."""
    for c in candidates:
        if c <= dim and dim % c == 0:
            return c
    return dim


def _head_group_size(num_heads, head_dim):
    """Heads per flash grid step so the block lane width (G*head_dim) is either
    a multiple of 128 (lane-dense stores) or the full channel dim (layout-legal)."""
    if head_dim % 128 == 0:
        return 1
    if 128 % head_dim == 0:
        g = 128 // head_dim
        if g <= num_heads and num_heads % g == 0:
            return g
    return num_heads  # block covers the full C axis -> always layout-legal


# ---------------------------------------------------------------------------
# Fused QKV projection: one x block feeds three matmuls; q is pre-scaled.
# ---------------------------------------------------------------------------
def _qkv_proj_kernel(x_ref, wq_ref, wk_ref, wv_ref, q_ref, k_ref, v_ref, *, scale):
    x = x_ref[...]
    q = jnp.dot(x, wq_ref[...], preferred_element_type=jnp.float32)
    k = jnp.dot(x, wk_ref[...], preferred_element_type=jnp.float32)
    v = jnp.dot(x, wv_ref[...], preferred_element_type=jnp.float32)
    # Fold the softmax scale into q here (f32, projection epilogue) so the
    # flash kernel never rescales per kv step.
    q_ref[...] = (q * scale).astype(q_ref.dtype)
    k_ref[...] = k.astype(k_ref.dtype)
    v_ref[...] = v.astype(v_ref.dtype)


def _qkv_projection(x2d, wq_t, wk_t, wv_t, scale, out_dtype):
    M, K = x2d.shape
    Cout = wq_t.shape[1]
    tm = _pick_tile(M, (512, 256, 128, 64, 32, 16, 8))
    tn = _pick_tile(Cout, (512, 256, 128))
    # TODO(synk): add an innermost K grid axis + f32 accumulator if K (=C) grows
    # beyond a few thousand or tiles are enlarged further (VMEM on v7x).

    x_spec = pl.BlockSpec((tm, K), lambda i, j: (i, 0))
    w_spec = pl.BlockSpec((K, tn), lambda i, j: (0, j))
    o_spec = pl.BlockSpec((tm, tn), lambda i, j: (i, j))
    o_sds = jax.ShapeDtypeStruct((M, Cout), out_dtype)

    return pl.pallas_call(
        functools.partial(_qkv_proj_kernel, scale=scale),
        out_shape=(o_sds, o_sds, o_sds),
        grid_spec=pltpu.PrefetchScalarGridSpec(
            num_scalar_prefetch=0,
            grid=(M // tm, Cout // tn),
            in_specs=[x_spec, w_spec, w_spec, w_spec],
            out_specs=(o_spec, o_spec, o_spec),
        ),
        compiler_params=pltpu.CompilerParams(
            dimension_semantics=("parallel", "parallel"),
            vmem_limit_bytes=_vmem_limit(),
        ),
    )(x2d, wq_t, wk_t, wv_t)


# ---------------------------------------------------------------------------
# Output projection: y = x @ W + b, f32 accumulation, f32 bias add.
# ---------------------------------------------------------------------------
def _linear_bias_kernel(x_ref, w_ref, b_ref, o_ref):
    acc = jnp.dot(x_ref[...], w_ref[...], preferred_element_type=jnp.float32)
    acc = acc + b_ref[...].astype(jnp.float32)
    o_ref[...] = acc.astype(o_ref.dtype)


def _linear_bias(x2d, w_t, bias, out_dtype):
    M, K = x2d.shape
    _, Nout = w_t.shape
    tm = _pick_tile(M, (512, 256, 128, 64, 32, 16, 8))
    tn = _pick_tile(Nout, (512, 256, 128))

    return pl.pallas_call(
        _linear_bias_kernel,
        out_shape=jax.ShapeDtypeStruct((M, Nout), out_dtype),
        grid_spec=pltpu.PrefetchScalarGridSpec(
            num_scalar_prefetch=0,
            grid=(M // tm, Nout // tn),
            in_specs=[
                pl.BlockSpec((tm, K), lambda i, j: (i, 0)),
                pl.BlockSpec((K, tn), lambda i, j: (0, j)),
                pl.BlockSpec((1, tn), lambda i, j: (0, j)),
            ],
            out_specs=pl.BlockSpec((tm, tn), lambda i, j: (i, j)),
        ),
        compiler_params=pltpu.CompilerParams(
            dimension_semantics=("parallel", "parallel"),
            vmem_limit_bytes=_vmem_limit(),
        ),
    )(x2d, w_t, bias)


# ---------------------------------------------------------------------------
# Flash attention core: grid (B, head-groups, q-tiles, kv-tiles), online softmax.
# q is pre-scaled; heads live as contiguous lane slices of the (B, N, C) layout.
# ---------------------------------------------------------------------------
def _flash_kernel(q_ref, k_ref, v_ref, o_ref, m_sc, l_sc, acc_sc, *,
                  heads_per_step, head_dim):
    ki = pl.program_id(3)

    @pl.when(ki == 0)
    def _():
        m_sc[...] = jnp.full_like(m_sc, -jnp.inf)
        l_sc[...] = jnp.zeros_like(l_sc)
        acc_sc[...] = jnp.zeros_like(acc_sc)

    # Per-head running stats are packed into one (tq, G) scratch each; the
    # accumulator is one lane-dense (tq, G*hd) slab shared by the head group.
    for h in range(heads_per_step):
        dsl = slice(h * head_dim, (h + 1) * head_dim)
        q = q_ref[:, dsl]                       # (tq, hd)  bf16, pre-scaled
        k = k_ref[:, dsl]                       # (tk, hd)
        v = v_ref[:, dsl]                       # (tk, hd)

        # Contract on the trailing dim of both operands (no materialized k.T).
        s = lax.dot_general(q, k, (((1,), (1,)), ((), ())),
                            preferred_element_type=jnp.float32)   # (tq, tk) f32

        m_prev = m_sc[:, h:h + 1]
        m_new = jnp.maximum(m_prev, jnp.max(s, axis=-1, keepdims=True))
        alpha = jnp.exp(m_prev - m_new)
        p = jnp.exp(s - m_new)                                    # f32 softmax math
        l_sc[:, h:h + 1] = alpha * l_sc[:, h:h + 1] + jnp.sum(p, axis=-1, keepdims=True)
        acc_sc[:, dsl] = alpha * acc_sc[:, dsl] + jnp.dot(
            p.astype(v.dtype), v, preferred_element_type=jnp.float32)
        m_sc[:, h:h + 1] = m_new

    @pl.when(ki == pl.num_programs(3) - 1)
    def _():
        # Exact reciprocal: runs once per q tile, so it is effectively free and
        # recovers tight numerics.  (No mask exists, so l > 0 always.)
        for h in range(heads_per_step):
            dsl = slice(h * head_dim, (h + 1) * head_dim)
            inv_l = 1.0 / l_sc[:, h:h + 1]
            o_ref[:, dsl] = (acc_sc[:, dsl] * inv_l).astype(o_ref.dtype)


def _flash_attention(q, k, v, num_heads):
    """q, k, v: (B, N, C) with heads contiguous along C -> ctx (B, N, C)."""
    B, N, C = q.shape
    H = num_heads
    hd = C // H
    G = _head_group_size(H, hd)
    HG = H // G
    gw = G * hd                      # lane width per head group (128-dense or full C)

    tq = _pick_tile(N, (256, 128, 64, 32, 16, 8))
    tk = _pick_tile(N, (512, 256, 128, 64, 32, 16, 8))
    if max(tq, tk) > 1024:
        # TODO(synk): pad N to a multiple of 128 and mask the pad keys instead of
        # silently materializing a huge (N, N) score tile.
        raise NotImplementedError(
            f"sequence length {N} has no tile divisor; pad/mask not implemented")

    kernel = functools.partial(_flash_kernel, heads_per_step=G, head_dim=hd)
    q_spec = pl.BlockSpec((pl.Squeezed(), tq, gw), lambda b, hg, qi, ki: (b, qi, hg))
    kv_spec = pl.BlockSpec((pl.Squeezed(), tk, gw), lambda b, hg, qi, ki: (b, ki, hg))
    # NOTE: add pipeline_mode=pl.Buffered(3) to kv_spec if profiles show exposed DMA.

    return pl.pallas_call(
        kernel,
        out_shape=jax.ShapeDtypeStruct((B, N, C), q.dtype),
        grid_spec=pltpu.PrefetchScalarGridSpec(
            num_scalar_prefetch=0,
            grid=(B, HG, N // tq, N // tk),
            in_specs=[q_spec, kv_spec, kv_spec],
            out_specs=pl.BlockSpec((pl.Squeezed(), tq, gw),
                                   lambda b, hg, qi, ki: (b, qi, hg)),
            scratch_shapes=[
                pltpu.VMEM((tq, G), jnp.float32),    # running max  m  (per head)
                pltpu.VMEM((tq, G), jnp.float32),    # running sum  l  (per head)
                pltpu.VMEM((tq, gw), jnp.float32),   # output accumulator (lane-dense)
            ],
        ),
        compiler_params=pltpu.CompilerParams(
            dimension_semantics=("parallel", "parallel", "parallel", "arbitrary"),
            vmem_limit_bytes=_vmem_limit(),
        ),
    )(q, k, v)


# ---------------------------------------------------------------------------
# Full forward pass (matches the PyTorch Attention.forward, qkv_bias=False).
# ---------------------------------------------------------------------------
def attention_pallas(x, wqkv_t, wproj_t, bproj, num_heads,
                     compute_dtype=jnp.bfloat16):
    B, N, C = x.shape
    H = num_heads
    assert C % H == 0, "dim must be divisible by num_heads"
    hd = C // H
    scale = hd ** (-0.5)
    out_dtype = x.dtype

    # One-time weight prep (in a real model these live pre-split / pre-cast).
    wq_t = wqkv_t[:, 0 * C:1 * C].astype(compute_dtype)
    wk_t = wqkv_t[:, 1 * C:2 * C].astype(compute_dtype)
    wv_t = wqkv_t[:, 2 * C:3 * C].astype(compute_dtype)
    wp_t = wproj_t.astype(compute_dtype)
    bias = bproj.astype(jnp.float32)

    # 1) Fused QKV projection -> q (pre-scaled), k, v each (B*N, C) in bf16.
    x2d = x.reshape(B * N, C).astype(compute_dtype)
    q, k, v = _qkv_projection(x2d, wq_t, wk_t, wv_t, scale, compute_dtype)

    # 2) Flash attention directly on the (B, N, C) head-contiguous layout.
    #    (free reshapes only; attn_drop is identity, p=0.0)
    q = q.reshape(B, N, C)
    k = k.reshape(B, N, C)
    v = v.reshape(B, N, C)
    ctx = _flash_attention(q, k, v, num_heads=H)      # (B, N, C), heads merged

    # 3) Output projection (proj_drop is identity, p=0.0), f32 output.
    out = _linear_bias(ctx.reshape(B * N, C), wp_t, bias, out_dtype)
    return out.reshape(B, N, C)


def attention_reference(x, wqkv_t, wproj_t, bproj, num_heads):
    """Pure-JAX f32 reference matching the PyTorch forward pass."""
    B, N, C = x.shape
    hd = C // num_heads
    scale = hd ** (-0.5)
    qkv = jnp.einsum("bnc,cd->bnd", x, wqkv_t)                 # (B, N, 3C)
    qkv = qkv.reshape(B, N, 3, num_heads, hd).transpose(2, 0, 3, 1, 4)
    q, k, v = qkv[0], qkv[1], qkv[2]                           # (B, H, N, hd)
    attn = jnp.einsum("bhqd,bhkd->bhqk", q, k) * scale
    attn = jax.nn.softmax(attn, axis=-1)
    ctx = jnp.einsum("bhqk,bhkd->bhqd", attn, v)               # (B, H, N, hd)
    ctx = ctx.transpose(0, 2, 1, 3).reshape(B, N, C)
    return jnp.einsum("bnc,cd->bnd", ctx, wproj_t) + bproj.reshape(1, 1, C)


if __name__ == "__main__":
    B, N, C = 2, 8, 32
    num_heads = 8

    key = jax.random.PRNGKey(0)
    kx, kw1, kw2, kb = jax.random.split(key, 4)

    x = jax.random.normal(kx, (B, N, C), dtype=jnp.float32)
    # Weights stored pre-transposed as (in, out); matches nn.Linear(dim, 3*dim)
    # (qkv_bias=False) and nn.Linear(dim, dim).
    wqkv_t = jax.random.normal(kw1, (C, 3 * C), dtype=jnp.float32) * (1.0 / math.sqrt(C))
    wproj_t = jax.random.normal(kw2, (C, C), dtype=jnp.float32) * (1.0 / math.sqrt(C))
    bproj = jax.random.normal(kb, (1, C), dtype=jnp.float32) * 0.02

    out = attention_pallas(x, wqkv_t, wproj_t, bproj, num_heads)
    out = jax.block_until_ready(out)
    assert out.shape == (B, N, C)
    assert out.dtype == x.dtype

    # The kernel feeds bf16 operands to the MXU (f32 accumulation / f32 softmax).
    # Compare against the f32 reference evaluated on bf16-rounded operands so the
    # check isolates kernel error from operand-quantization error.
    def _bf(a):
        return a.astype(jnp.bfloat16).astype(jnp.float32)

    ref_bf = attention_reference(_bf(x), _bf(wqkv_t), _bf(wproj_t), bproj, num_heads)
    ref_f32 = attention_reference(x, wqkv_t, wproj_t, bproj, num_heads)
    err_bf = float(jnp.max(jnp.abs(out - ref_bf)))
    err_f32 = float(jnp.max(jnp.abs(out - ref_f32)))
    assert jnp.allclose(out, ref_bf, atol=2e-2, rtol=2e-2), (
        f"mismatch vs bf16-rounded reference: {err_bf} (vs f32 ref: {err_f32})")

    print("KERNEL_OK")
</pallas_src>

<mosaic_0001>
module attributes {stable_mosaic.version = 11 : i64} {
  func.func @_qkv_proj_kernel(%arg0: i32, %arg1: i32, %arg2: memref<16x32xbf16, #tpu.memory_space<vmem>>, %arg3: memref<32x32xbf16, #tpu.memory_space<vmem>>, %arg4: memref<32x32xbf16, #tpu.memory_space<vmem>>, %arg5: memref<32x32xbf16, #tpu.memory_space<vmem>>, %arg6: memref<16x32xbf16, #tpu.memory_space<vmem>>, %arg7: memref<16x32xbf16, #tpu.memory_space<vmem>>, %arg8: memref<16x32xbf16, #tpu.memory_space<vmem>>) attributes {dimension_semantics = [#tpu.dimension_semantics<parallel>, #tpu.dimension_semantics<parallel>], iteration_bounds = array<i64: 1, 1>, scalar_prefetch = 0 : i64, scratch_operands = 0 : i64, tpu.core_type = #tpu.core_type<tc>, window_params = [{transform_indices = @transform_0, window_bounds = array<i64: 16, 32>}, {transform_indices = @transform_1, window_bounds = array<i64: 32, 32>}, {transform_indices = @transform_2, window_bounds = array<i64: 32, 32>}, {transform_indices = @transform_3, window_bounds = array<i64: 32, 32>}, {transform_indices = @transform_4, window_bounds = array<i64: 16, 32>}, {transform_indices = @transform_5, window_bounds = array<i64: 16, 32>}, {transform_indices = @transform_6, window_bounds = array<i64: 16, 32>}]} {
    %c0 = arith.constant 0 : index
    %c0_0 = arith.constant 0 : index
    %0 = vector.load %arg2[%c0, %c0_0] : memref<16x32xbf16, #tpu.memory_space<vmem>>, vector<16x32xbf16>
    %c0_1 = arith.constant 0 : index
    %c0_2 = arith.constant 0 : index
    %1 = vector.load %arg3[%c0_1, %c0_2] : memref<32x32xbf16, #tpu.memory_space<vmem>>, vector<32x32xbf16>
    %cst = arith.constant dense<0.000000e+00> : vector<16x32xf32>
    %2 = tpu.matmul %0, %1, %cst {dimension_numbers = #tpu.dot_dimension_numbers<[1], [0], [0], [1], [0, 0, 1, 1], [], []>} : vector<16x32xbf16>, vector<32x32xbf16>, vector<16x32xf32> -> vector<16x32xf32>
    %c0_3 = arith.constant 0 : index
    %c0_4 = arith.constant 0 : index
    %3 = vector.load %arg4[%c0_3, %c0_4] : memref<32x32xbf16, #tpu.memory_space<vmem>>, vector<32x32xbf16>
    %cst_5 = arith.constant dense<0.000000e+00> : vector<16x32xf32>
    %4 = tpu.matmul %0, %3, %cst_5 {dimension_numbers = #tpu.dot_dimension_numbers<[1], [0], [0], [1], [0, 0, 1, 1], [], []>} : vector<16x32xbf16>, vector<32x32xbf16>, vector<16x32xf32> -> vector<16x32xf32>
    %c0_6 = arith.constant 0 : index
    %c0_7 = arith.constant 0 : index
    %5 = vector.load %arg5[%c0_6, %c0_7] : memref<32x32xbf16, #tpu.memory_space<vmem>>, vector<32x32xbf16>
    %cst_8 = arith.constant dense<0.000000e+00> : vector<16x32xf32>
    %6 = tpu.matmul %0, %5, %cst_8 {dimension_numbers = #tpu.dot_dimension_numbers<[1], [0], [0], [1], [0, 0, 1, 1], [], []>} : vector<16x32xbf16>, vector<32x32xbf16>, vector<16x32xf32> -> vector<16x32xf32>
    %cst_9 = arith.constant 5.000000e-01 : f32
    %7 = vector.broadcast %cst_9 : f32 to vector<16x32xf32>
    %8 = arith.mulf %2, %7 : vector<16x32xf32>
    %9 = arith.truncf %8 : vector<16x32xf32> to vector<16x32xbf16>
    %c0_10 = arith.constant 0 : index
    %c0_11 = arith.constant 0 : index
    %10 = vector.load %arg6[%c0_10, %c0_11] : memref<16x32xbf16, #tpu.memory_space<vmem>>, vector<16x32xbf16>
    tpu.vector_store %arg6[%c0_10, %c0_11], %9 {strides = array<i32>} : memref<16x32xbf16, #tpu.memory_space<vmem>>, vector<16x32xbf16>,
    %11 = arith.truncf %4 : vector<16x32xf32> to vector<16x32xbf16>
    %c0_12 = arith.constant 0 : index
    %c0_13 = arith.constant 0 : index
    %12 = vector.load %arg7[%c0_12, %c0_13] : memref<16x32xbf16, #tpu.memory_space<vmem>>, vector<16x32xbf16>
    tpu.vector_store %arg7[%c0_12, %c0_13], %11 {strides = array<i32>} : memref<16x32xbf16, #tpu.memory_space<vmem>>, vector<16x32xbf16>,
    %13 = arith.truncf %6 : vector<16x32xf32> to vector<16x32xbf16>
    %c0_14 = arith.constant 0 : index
    %c0_15 = arith.constant 0 : index
    %14 = vector.load %arg8[%c0_14, %c0_15] : memref<16x32xbf16, #tpu.memory_space<vmem>>, vector<16x32xbf16>
    tpu.vector_store %arg8[%c0_14, %c0_15], %13 {strides = array<i32>} : memref<16x32xbf16, #tpu.memory_space<vmem>>, vector<16x32xbf16>,
    return
  }
  func.func @transform_0(%arg0: i32, %arg1: i32) -> (i32, i32) {
    %c0_i32 = arith.constant 0 : i32
    %c0_i32_0 = arith.constant 0 : i32
    return %arg0, %c0_i32 : i32, i32
  }
  func.func @transform_1(%arg0: i32, %arg1: i32) -> (i32, i32) {
    %c0_i32 = arith.constant 0 : i32
    %c0_i32_0 = arith.constant 0 : i32
    return %c0_i32, %arg1 : i32, i32
  }
  func.func @transform_2(%arg0: i32, %arg1: i32) -> (i32, i32) {
    %c0_i32 = arith.constant 0 : i32
    %c0_i32_0 = arith.constant 0 : i32
    return %c0_i32, %arg1 : i32, i32
  }
  func.func @transform_3(%arg0: i32, %arg1: i32) -> (i32, i32) {
    %c0_i32 = arith.constant 0 : i32
    %c0_i32_0 = arith.constant 0 : i32
    return %c0_i32, %arg1 : i32, i32
  }
  func.func @transform_4(%arg0: i32, %arg1: i32) -> (i32, i32) {
    %c0_i32 = arith.constant 0 : i32
    return %arg0, %arg1 : i32, i32
  }
  func.func @transform_5(%arg0: i32, %arg1: i32) -> (i32, i32) {
    %c0_i32 = arith.constant 0 : i32
    return %arg0, %arg1 : i32, i32
  }
  func.func @transform_6(%arg0: i32, %arg1: i32) -> (i32, i32) {
    %c0_i32 = arith.constant 0 : i32
    return %arg0, %arg1 : i32, i32
  }
}

</mosaic_0001>

<llo_original>
// kernel: tpu_custom_call.1
$region0: #{tpu_custom_call.1}
  #allocation0 [shape = 'u32[]', space=smem, size = 0x4, offset = 0x4, fixed_abs, tag = 'smem constant byte address 0x4 - core index']
  #allocation1 [shape = 'u32[144,128]{1,0:T(1,128)}', space=vmem, size = 0x12000, scoped, tag = 'internal scratch']
  %s0 = inlined_call_operand.hbm [shape: bf16[16,32], index: 0, kind: input, shape index: {}]
  %s1 = inlined_call_operand.hbm [shape: bf16[32,32], index: 1, kind: input, shape index: {}]
  %s2 = inlined_call_operand.hbm [shape: bf16[32,32], index: 2, kind: input, shape index: {}]
  %s3 = inlined_call_operand.hbm [shape: bf16[32,32], index: 3, kind: input, shape index: {}]
  %s4 = inlined_call_operand.hbm [shape: bf16[16,32], index: 4, kind: output, shape index: {0}]
  %s5 = inlined_call_operand.hbm [shape: bf16[16,32], index: 5, kind: output, shape index: {1}]
  %s6 = inlined_call_operand.hbm [shape: bf16[16,32], index: 6, kind: output, shape index: {2}]
  %7 = xla_tuple %s4, %s5, %s6
  %s8 = sld [smem:[#allocation0]]
  $region58: #{tpu_custom_call.1} parent=0
    _
  %s10 = ssub.s32 1, %s8
  %s11 = scalar_select 0, %s10, %s8
  $region1: #{tpu_custom_call.1} parent=0
    #allocation2 [shape = 'u8[4096]{0}', space=vmem, size = 0x1000, scoped, tag = 'input window, operand 0, single buffered']
    #allocation3 [shape = 's32[1]{0}', space=sflag, size = 0x4, scoped, tag = 'scoped memory for tpu_custom_call.1']
    #allocation4 [shape = 's32[1]{0}', space=sflag, size = 0x4, scoped, tag = 'scoped memory for tpu_custom_call.1']
    #allocation5 [shape = 'u8[8192]{0}', space=vmem, size = 0x2000, scoped, tag = 'input window, operand 1, single buffered']
    #allocation6 [shape = 's32[1]{0}', space=sflag, size = 0x4, scoped, tag = 'scoped memory for tpu_custom_call.1']
    #allocation7 [shape = 'u8[8192]{0}', space=vmem, size = 0x2000, scoped, tag = 'input window, operand 2, single buffered']
    #allocation8 [shape = 'u8[8192]{0}', space=vmem, size = 0x2000, scoped, tag = 'input window, operand 3, single buffered']
    #allocation9 [shape = 's32[1]{0}', space=sflag, size = 0x4, scoped, tag = 'scoped memory for tpu_custom_call.1']
    #allocation10 [shape = 'u8[4096]{0}', space=vmem, size = 0x1000, scoped, tag = 'output window, operand 0, single buffered']
    #allocation11 [shape = 'u8[4096]{0}', space=vmem, size = 0x1000, scoped, tag = 'output window, operand 1, single buffered']
    #allocation12 [shape = 's32[1]{0}', space=sflag, size = 0x4, scoped, tag = 'scoped memory for tpu_custom_call.1']
    #allocation13 [shape = 'u8[4096]{0}', space=vmem, size = 0x1000, scoped, tag = 'output window, operand 2, single buffered']
    %12 = vsyncpa [#allocation3], 0
    %13 = vsyncpa [#allocation6], 0
    %14 = vsyncpa [#allocation9], 0
    %15 = vsyncpa [#allocation4], 0
    %16 = vsyncpa [#allocation12], 0
    // Predicated region
    $region2: #{tpu_custom_call.1} parent=1 // pred_check
      _
    $region3: #{tpu_custom_call.1} parent=1 // pred_check_branch
      %18 = sbr.rel (0) target = $region5
    $region4: #{tpu_custom_call.1} parent=1 // pred_region
      %s20 = ssub.s32 128, 128
      %21 = vsyncadd [#allocation3], %s20
      %s22 = sshll.u32 [#allocation2], 4
      %s23 = int_to_ptr.vmem [resolvable:$true] %s22
      %28 = dma.hbm_to_vmem [thread:$0]  %s0, 128, %s23, [#allocation3], 64, 64, 4
    $region5: #{tpu_custom_call.1} parent=1 // pred_fallthru
      _
    // Predicated region
    $region6: #{tpu_custom_call.1} parent=1 // pred_check
      _
    $region7: #{tpu_custom_call.1} parent=1 // pred_check_branch
      %30 = sbr.rel (0) target = $region9
    $region8: #{tpu_custom_call.1} parent=1 // pred_region
      %s32 = ssub.s32 256, 256
      %33 = vsyncadd [#allocation6], %s32
      %s34 = sshll.u32 [#allocation5], 4
      %s35 = int_to_ptr.vmem [resolvable:$true] %s34
      %40 = dma.hbm_to_vmem [thread:$0]  %s1, 256, %s35, [#allocation6], 64, 64, 4
    $region9: #{tpu_custom_call.1} parent=1 // pred_fallthru
      _
    // Predicated region
    $region10: #{tpu_custom_call.1} parent=1 // pred_check
      _
    $region11: #{tpu_custom_call.1} parent=1 // pred_check_branch
      %42 = sbr.rel (0) target = $region13
    $region12: #{tpu_custom_call.1} parent=1 // pred_region
      %s44 = ssub.s32 256, 256
      %45 = vsyncadd [#allocation6], %s44
      %s46 = sshll.u32 [#allocation7], 4
      %s47 = int_to_ptr.vmem [resolvable:$true] %s46
      %52 = dma.hbm_to_vmem [thread:$0]  %s2, 256, %s47, [#allocation6], 64, 64, 4
    $region13: #{tpu_custom_call.1} parent=1 // pred_fallthru
      _
    // Predicated region
    $region14: #{tpu_custom_call.1} parent=1 // pred_check
      _
    $region15: #{tpu_custom_call.1} parent=1 // pred_check_branch
      %54 = sbr.rel (0) target = $region17
    $region16: #{tpu_custom_call.1} parent=1 // pred_region
      %s56 = ssub.s32 256, 256
      %57 = vsyncadd [#allocation9], %s56
      %s58 = sshll.u32 [#allocation8], 4
      %s59 = int_to_ptr.vmem [resolvable:$true] %s58
      %64 = dma.hbm_to_vmem [thread:$0]  %s3, 256, %s59, [#allocation9], 64, 64, 4
    $region17: #{tpu_custom_call.1} parent=1 // pred_fallthru
      _
    // Predicated region
    $region18: #{tpu_custom_call.1} parent=1 // pred_check
      _
    $region19: #{tpu_custom_call.1} parent=1 // pred_check_branch
      %66 = sbr.rel (0) target = $region21
    $region20: #{tpu_custom_call.1} parent=1 // pred_region
      %67 = dma.done [#allocation3], 128
    $region21: #{tpu_custom_call.1} parent=1 // pred_fallthru
      _
    // Predicated region
    $region22: #{tpu_custom_call.1} parent=1 // pred_check
      _
    $region23: #{tpu_custom_call.1} parent=1 // pred_check_branch
      %69 = sbr.rel (0) target = $region25
    $region24: #{tpu_custom_call.1} parent=1 // pred_region
      %70 = dma.done [#allocation6], 256
    $region25: #{tpu_custom_call.1} parent=1 // pred_fallthru
      _
    // Predicated region
    $region26: #{tpu_custom_call.1} parent=1 // pred_check
      _
    $region27: #{tpu_custom_call.1} parent=1 // pred_check_branch
      %72 = sbr.rel (0) target = $region29
    $region28: #{tpu_custom_call.1} parent=1 // pred_region
      %73 = dma.done [#allocation6], 256
    $region29: #{tpu_custom_call.1} parent=1 // pred_fallthru
      _
    // Predicated region
    $region30: #{tpu_custom_call.1} parent=1 // pred_check
      _
    $region31: #{tpu_custom_call.1} parent=1 // pred_check_branch
      %75 = sbr.rel (0) target = $region33
    $region32: #{tpu_custom_call.1} parent=1 // pred_region
      %76 = dma.done [#allocation9], 256
    $region33: #{tpu_custom_call.1} parent=1 // pred_fallthru
      _
    %v78 = vld [vmem:[#allocation2] sm:$0xf]
    %v79 = vld [vmem:[#allocation2 + $0x4] sm:$0xf]
    %v80 = vld [vmem:[#allocation5] sm:$0xf]
    %v81 = vld [vmem:[#allocation5 + $0x4] sm:$0xf]
    %v82 = vld [vmem:[#allocation5 + $0x8] sm:$0xf]
    %v83 = vld [vmem:[#allocation5 + $0xc] sm:$0xf]
    %v86 = vunpack.c.l.b16 %v78
    %v87 = vunpack.c.l.b16 %v79
    %v88 = vpack.c.b16 %v87, %v86
    %v93 = vunpack.c.l.b16 %v80
    %v94 = vunpack.c.l.b16 %v81
    %v95 = vunpack.c.l.b16 %v82
    %v96 = vunpack.c.l.b16 %v83
    %v97 = vpack.c.b16 %v94, %v93
    %v98 = vpack.c.b16 %v96, %v95
    %vm101 = vcmask 261120
    %v103 = vsel %vm101, %v88, 0
    %105 = vmatprep.subr.bf16.mxu0 0
    %106 = vmatpush1.bf16.msra.mxu0 %v97
    %107 = vmatprep.subr.bf16.mxu0 0
    %108 = vmatpush1.bf16.msra.mxu0 %v98
    %109 = vmatprep.subr.bf16.mxu0 0
    %110 = vmatpush1.bf16.msra.mxu0 0
    %111 = vmatprep.subr.bf16.mxu0 0
    %112 = vmatpush1.bf16.msra.mxu0 0
    %113 = vmatprep.subr.bf16.mxu0 0
    %114 = vmatpush1.bf16.msra.mxu0 0
    %115 = vmatprep.subr.bf16.mxu0 0
    %116 = vmatpush1.bf16.msra.mxu0 0
    %117 = vmatprep.subr.bf16.mxu0 0
    %118 = vmatpush1.bf16.msra.mxu0 0
    %119 = vmatprep.subr.bf16.mxu0 0
    %120 = vmatpush1.bf16.msra.mxu0 0
    %121 = vmatprep.subr.bf16.mxu0 0
    %122 = vmatpush1.bf16.msra.mxu0 0
    %123 = vmatprep.subr.bf16.mxu0 0
    %124 = vmatpush1.bf16.msra.mxu0 0
    %125 = vmatprep.subr.bf16.mxu0 0
    %126 = vmatpush1.bf16.msra.mxu0 0
    %127 = vmatprep.subr.bf16.mxu0 0
    %128 = vmatpush1.bf16.msra.mxu0 0
    %129 = vmatprep.subr.bf16.mxu0 0
    %130 = vmatpush1.bf16.msra.mxu0 0
    %131 = vmatprep.subr.bf16.mxu0 0
    %132 = vmatpush1.bf16.msra.mxu0 0
    %133 = vmatprep.subr.bf16.mxu0 0
    %134 = vmatpush1.bf16.msra.mxu0 0
    %135 = vmatprep.subr.bf16.mxu0 0
    %136 = vmatpush1.bf16.msra.mxu0 0
    %137 = vmatprep.mubr.bf16.mxu0 0
    %138 = vmatmul.mubr.bf16.gmra.mrb[0].mxu0 %v103
    %v139 = vpop.f32.mrb[0].mxu0
    %v140 = vadd.f32 0.0, %v139
    %v141 = vpop.f32.mrb[0].mxu0
    %v142 = vpop.f32.mrb[0].mxu0
    %v143 = vadd.f32 0.0, %v142
    %v144 = vpop.f32.mrb[0].mxu0
    %145 = vdwg.mxu0
    %v146 = vld [vmem:[#allocation7] sm:$0xf]
    %v147 = vld [vmem:[#allocation7 + $0x4] sm:$0xf]
    %v148 = vld [vmem:[#allocation7 + $0x8] sm:$0xf]
    %v149 = vld [vmem:[#allocation7 + $0xc] sm:$0xf]
    %v154 = vunpack.c.l.b16 %v146
    %v155 = vunpack.c.l.b16 %v147
    %v156 = vunpack.c.l.b16 %v148
    %v157 = vunpack.c.l.b16 %v149
    %v158 = vpack.c.b16 %v155, %v154
    %v159 = vpack.c.b16 %v157, %v156
    %162 = vmatprep.subr.bf16.mxu0 0
    %163 = vmatpush1.bf16.msra.mxu0 %v158
    %164 = vmatprep.subr.bf16.mxu0 0
    %165 = vmatpush1.bf16.msra.mxu0 %v159
    %166 = vmatprep.subr.bf16.mxu0 0
    %167 = vmatpush1.bf16.msra.mxu0 0
    %168 = vmatprep.subr.bf16.mxu0 0
    %169 = vmatpush1.bf16.msra.mxu0 0
    %170 = vmatprep.subr.bf16.mxu0 0
    %171 = vmatpush1.bf16.msra.mxu0 0
    %172 = vmatprep.subr.bf16.mxu0 0
    %173 = vmatpush1.bf16.msra.mxu0 0
    %174 = vmatprep.subr.bf16.mxu0 0
    %175 = vmatpush1.bf16.msra.mxu0 0
    %176 = vmatprep.subr.bf16.mxu0 0
    %177 = vmatpush1.bf16.msra.mxu0 0
    %178 = vmatprep.subr.bf16.mxu0 0
    %179 = vmatpush1.bf16.msra.mxu0 0
    %180 = vmatprep.subr.bf16.mxu0 0
    %181 = vmatpush1.bf16.msra.mxu0 0
    %182 = vmatprep.subr.bf16.mxu0 0
    %183 = vmatpush1.bf16.msra.mxu0 0
    %184 = vmatprep.subr.bf16.mxu0 0
    %185 = vmatpush1.bf16.msra.mxu0 0
    %186 = vmatprep.subr.bf16.mxu0 0
    %187 = vmatpush1.bf16.msra.mxu0 0
    %188 = vmatprep.subr.bf16.mxu0 0
    %189 = vmatpush1.bf16.msra.mxu0 0
    %190 = vmatprep.subr.bf16.mxu0 0
    %191 = vmatpush1.bf16.msra.mxu0 0
    %192 = vmatprep.subr.bf16.mxu0 0
    %193 = vmatpush1.bf16.msra.mxu0 0
    %194 = vmatprep.mubr.bf16.mxu0 0
    %195 = vmatmul.mubr.bf16.gmra.mrb[0].mxu0 %v103
    %v196 = vpop.f32.mrb[0].mxu0
    %v197 = vadd.f32 0.0, %v196
    %v198 = vpop.f32.mrb[0].mxu0
    %v199 = vpop.f32.mrb[0].mxu0
    %v200 = vadd.f32 0.0, %v199
    %v201 = vpop.f32.mrb[0].mxu0
    %202 = vdwg.mxu0
    %v203 = vld [vmem:[#allocation8] sm:$0xf]
    %v204 = vld [vmem:[#allocation8 + $0x4] sm:$0xf]
    %v205 = vld [vmem:[#allocation8 + $0x8] sm:$0xf]
    %v206 = vld [vmem:[#allocation8 + $0xc] sm:$0xf]
    %v211 = vunpack.c.l.b16 %v203
    %v212 = vunpack.c.l.b16 %v204
    %v213 = vunpack.c.l.b16 %v205
    %v214 = vunpack.c.l.b16 %v206
    %v215 = vpack.c.b16 %v212, %v211
    %v216 = vpack.c.b16 %v214, %v213
    %219 = vmatprep.subr.bf16.mxu0 0
    %220 = vmatpush1.bf16.msra.mxu0 %v215
    %221 = vmatprep.subr.bf16.mxu0 0
    %222 = vmatpush1.bf16.msra.mxu0 %v216
    %223 = vmatprep.subr.bf16.mxu0 0
    %224 = vmatpush1.bf16.msra.mxu0 0
    %225 = vmatprep.subr.bf16.mxu0 0
    %226 = vmatpush1.bf16.msra.mxu0 0
    %227 = vmatprep.subr.bf16.mxu0 0
    %228 = vmatpush1.bf16.msra.mxu0 0
    %229 = vmatprep.subr.bf16.mxu0 0
    %230 = vmatpush1.bf16.msra.mxu0 0
    %231 = vmatprep.subr.bf16.mxu0 0
    %232 = vmatpush1.bf16.msra.mxu0 0
    %233 = vmatprep.subr.bf16.mxu0 0
    %234 = vmatpush1.bf16.msra.mxu0 0
    %235 = vmatprep.subr.bf16.mxu0 0
    %236 = vmatpush1.bf16.msra.mxu0 0
    %237 = vmatprep.subr.bf16.mxu0 0
    %238 = vmatpush1.bf16.msra.mxu0 0
    %239 = vmatprep.subr.bf16.mxu0 0
    %240 = vmatpush1.bf16.msra.mxu0 0
    %241 = vmatprep.subr.bf16.mxu0 0
    %242 = vmatpush1.bf16.msra.mxu0 0
    %243 = vmatprep.subr.bf16.mxu0 0
    %244 = vmatpush1.bf16.msra.mxu0 0
    %245 = vmatprep.subr.bf16.mxu0 0
    %246 = vmatpush1.bf16.msra.mxu0 0
    %247 = vmatprep.subr.bf16.mxu0 0
    %248 = vmatpush1.bf16.msra.mxu0 0
    %249 = vmatprep.subr.bf16.mxu0 0
    %250 = vmatpush1.bf16.msra.mxu0 0
    %251 = vmatprep.mubr.bf16.mxu0 0
    %252 = vmatmul.mubr.bf16.gmra.mrb[0].mxu0 %v103
    %v253 = vpop.f32.mrb[0].mxu0
    %v254 = vadd.f32 0.0, %v253
    %v255 = vpop.f32.mrb[0].mxu0
    %v256 = vpop.f32.mrb[0].mxu0
    %v257 = vadd.f32 0.0, %v256
    %v258 = vpop.f32.mrb[0].mxu0
    %259 = vdwg.mxu0
    %v260 = vmul.f32 %v140, 0.5
    %v261 = vmul.f32 %v143, 0.5
    %v262 = vpack.c.bf16 %v261, %v260
    %v264 = vunpack.c.l.b16 %v262
    %v265 = vunpack.c.h.b16 %v262
    %v266 = vpack.c.b16 %v264, %v264
    %v267 = vpack.c.b16 %v265, %v265
    %vm270 = vcmask 257024
    %271 = vst.msk [vmem:[#allocation10] sm:$0xf] %vm270, %v266
    %272 = vst.msk [vmem:[#allocation10 + $0x4] sm:$0xf] %vm270, %v267
    %v273 = vpack.c.bf16 %v200, %v197
    %v275 = vunpack.c.l.b16 %v273
    %v276 = vunpack.c.h.b16 %v273
    %v277 = vpack.c.b16 %v275, %v275
    %v278 = vpack.c.b16 %v276, %v276
    %281 = vst.msk [vmem:[#allocation11] sm:$0xf] %vm270, %v277
    %282 = vst.msk [vmem:[#allocation11 + $0x4] sm:$0xf] %vm270, %v278
    %v283 = vpack.c.bf16 %v257, %v254
    %v285 = vunpack.c.l.b16 %v283
    %v286 = vunpack.c.h.b16 %v283
    %v287 = vpack.c.b16 %v285, %v285
    %v288 = vpack.c.b16 %v286, %v286
    %291 = vst.msk [vmem:[#allocation13] sm:$0xf] %vm270, %v287
    %292 = vst.msk [vmem:[#allocation13 + $0x4] sm:$0xf] %vm270, %v288
    // Predicated region
    $region34: #{tpu_custom_call.1} parent=1 // pred_check
      _
    $region35: #{tpu_custom_call.1} parent=1 // pred_check_branch
      %294 = sbr.rel (0) target = $region37
    $region36: #{tpu_custom_call.1} parent=1 // pred_region
      %s296 = ssub.s32 128, 128
      %297 = vsyncadd [#allocation4], %s296
      %s298 = sshll.u32 [#allocation10], 4
      %s299 = int_to_ptr.vmem [resolvable:$true] %s298
      %304 = dma.vmem_to_hbm [thread:$0]  %s299, 128, %s4, [#allocation4], 64, 64, 4
    $region37: #{tpu_custom_call.1} parent=1 // pred_fallthru
      _
    // Predicated region
    $region38: #{tpu_custom_call.1} parent=1 // pred_check
      _
    $region39: #{tpu_custom_call.1} parent=1 // pred_check_branch
      %306 = sbr.rel (0) target = $region41
    $region40: #{tpu_custom_call.1} parent=1 // pred_region
      %s308 = ssub.s32 128, 128
      %309 = vsyncadd [#allocation12], %s308
      %s310 = sshll.u32 [#allocation11], 4
      %s311 = int_to_ptr.vmem [resolvable:$true] %s310
      %316 = dma.vmem_to_hbm [thread:$0]  %s311, 128, %s5, [#allocation12], 64, 64, 4
    $region41: #{tpu_custom_call.1} parent=1 // pred_fallthru
      _
    // Predicated region
    $region42: #{tpu_custom_call.1} parent=1 // pred_check
      _
    $region43: #{tpu_custom_call.1} parent=1 // pred_check_branch
      %318 = sbr.rel (0) target = $region45
    $region44: #{tpu_custom_call.1} parent=1 // pred_region
      %s320 = ssub.s32 128, 128
      %321 = vsyncadd [#allocation12], %s320
      %s322 = sshll.u32 [#allocation13], 4
      %s323 = int_to_ptr.vmem [resolvable:$true] %s322
      %328 = dma.vmem_to_hbm [thread:$0]  %s323, 128, %s6, [#allocation12], 64, 64, 4
    $region45: #{tpu_custom_call.1} parent=1 // pred_fallthru
      _
    // Predicated region
    $region46: #{tpu_custom_call.1} parent=1 // pred_check
      _
    $region47: #{tpu_custom_call.1} parent=1 // pred_check_branch
      %330 = sbr.rel (0) target = $region49
    $region48: #{tpu_custom_call.1} parent=1 // pred_region
      %331 = dma.done [#allocation4], 128
    $region49: #{tpu_custom_call.1} parent=1 // pred_fallthru
      _
    // Predicated region
    $region50: #{tpu_custom_call.1} parent=1 // pred_check
      _
    $region51: #{tpu_custom_call.1} parent=1 // pred_check_branch
      %333 = sbr.rel (0) target = $region53
    $region52: #{tpu_custom_call.1} parent=1 // pred_region
      %334 = dma.done [#allocation12], 128
    $region53: #{tpu_custom_call.1} parent=1 // pred_fallthru
      _
    // Predicated region
    $region54: #{tpu_custom_call.1} parent=1 // pred_check
      _
    $region55: #{tpu_custom_call.1} parent=1 // pred_check_branch
      %336 = sbr.rel (0) target = $region57
    $region56: #{tpu_custom_call.1} parent=1 // pred_region
      %337 = dma.done [#allocation12], 128
    $region57: #{tpu_custom_call.1} parent=1 // pred_fallthru
      _
    %338 = vsyncpa [#allocation3], 1
    %339 = vsyncpa [#allocation6], 1
    %340 = vsyncpa [#allocation9], 1
    %341 = vsyncpa [#allocation4], 1
    %342 = vsyncpa [#allocation12], 1

</llo_original>
